<compile_context>
chip_gen: v6e
topology: v6e:2x2x1
jax: 0.10.0
libtpu: 0.0.40
codegen_flags: <defaults>
</compile_context>

<pallas_src>
import functools

import jax
import jax.numpy as jnp
import numpy as np
from jax.experimental import pallas as pl
from jax.experimental.pallas import tpu as pltpu


def _round_up(x, m):
    return ((x + m - 1) // m) * m


def _sine_layer_kernel(x_ref, w_ref, b_ref, o_ref, *, omega_0):
    # x_ref: (tm, K), w_ref: (K, tn), b_ref: (1, tn) [pre-scaled by omega_0],
    # o_ref: (tm, tn).
    z = jnp.dot(x_ref[...], w_ref[...], preferred_element_type=jnp.float32)
    # sin(omega_0 * (x@W.T + b)) == sin(omega_0*z + omega_0*b); the bias was
    # pre-scaled in the wrapper, so this is one fused multiply-add before sin.
    o_ref[...] = jnp.sin(omega_0 * z + b_ref[...]).astype(o_ref.dtype)


def sine_layer(x, w, b, *, omega_0=30.0, tm=256, tn=512):
    """SIREN SineLayer forward: sin(omega_0 * (x @ w.T + b)).

    x: (..., in_features) f32
    w: (out_features, in_features) f32   (nn.Linear layout)
    b: (out_features,) f32
    """
    orig_lead = x.shape[:-1]
    K = x.shape[-1]
    N, Kw = w.shape
    assert K == Kw, (K, Kw)

    x2 = x.reshape(-1, K).astype(jnp.float32)
    M = x2.shape[0]

    # ---- tile sizing -----------------------------------------------------
    # Row tile: big (amortize per-step overhead), but never larger than the
    # (8-aligned) batch so tiny inputs don't balloon with padding.
    tm_eff = _round_up(min(tm, _round_up(M, 8)), 8)
    M_pad = _round_up(M, tm_eff)

    # Output tile: lane-dense (multiple of 128) to avoid masked partial stores.
    N_pad = _round_up(N, 128)
    tn_eff = _round_up(min(tn, N_pad), 128)
    N_pad = _round_up(N_pad, tn_eff)

    # ---- zero padding (exact for the matmul; padded rows/cols sliced off) --
    x_p = jnp.zeros((M_pad, K), jnp.float32).at[:M, :].set(x2)
    w_t = (jnp.zeros((K, N_pad), jnp.float32)
           .at[:, :N].set(jnp.transpose(w).astype(jnp.float32)))
    b_s = (jnp.zeros((1, N_pad), jnp.float32)
           .at[0, :N].set(jnp.float32(omega_0) * b.astype(jnp.float32)))

    grid = (M_pad // tm_eff, N_pad // tn_eff)

    # VMEM budget: double-buffered x/out tiles + per-column weight/bias tiles.
    per_step_bytes = 4 * (tm_eff * K + K * tn_eff + tn_eff + tm_eff * tn_eff)
    vmem_limit = int(min(48 * 1024 * 1024,
                         max(4 * per_step_bytes, 16 * 1024 * 1024)))

    cost = pl.CostEstimate(
        flops=2 * M_pad * K * N_pad,
        transcendentals=M_pad * N_pad,
        bytes_accessed=4 * (M_pad * K + K * N_pad + N_pad + M_pad * N_pad),
    )

    kernel = functools.partial(_sine_layer_kernel, omega_0=float(omega_0))
    out = pl.pallas_call(
        kernel,
        out_shape=jax.ShapeDtypeStruct((M_pad, N_pad), jnp.float32),
        grid_spec=pltpu.PrefetchScalarGridSpec(
            num_scalar_prefetch=0,
            grid=grid,
            in_specs=[
                pl.BlockSpec((tm_eff, K), lambda i, j: (i, 0)),   # x row tile
                pl.BlockSpec((K, tn_eff), lambda i, j: (0, j)),   # weight col tile
                pl.BlockSpec((1, tn_eff), lambda i, j: (0, j)),   # pre-scaled bias
            ],
            out_specs=pl.BlockSpec((tm_eff, tn_eff), lambda i, j: (i, j)),
        ),
        compiler_params=pltpu.CompilerParams(
            dimension_semantics=("parallel", "parallel"),
            vmem_limit_bytes=vmem_limit,
        ),
        cost_estimate=cost,
    )(x_p, w_t, b_s)

    # TODO(synk): add a K-reduction grid axis (VMEM f32 accumulator, 'arbitrary'
    # axis placed last) for in_features beyond ~2k so the full contraction dim
    # never has to be resident per step.
    return out[:M, :N].reshape(*orig_lead, N)


def init_sine_layer_params(key, in_features, out_features, *, is_first, omega_0):
    """Deterministic replication of SineLayer.__init__/init_weights."""
    kw, kb = jax.random.split(key)
    if is_first:
        bound_w = 1.0 / in_features
    else:
        bound_w = float(np.sqrt(6.0 / in_features) / omega_0)
    # nn.Linear weight is (out, in); SineLayer re-initializes the weight only.
    w = jax.random.uniform(kw, (out_features, in_features), jnp.float32,
                           minval=-bound_w, maxval=bound_w)
    # Bias keeps nn.Linear's default init: U(-1/sqrt(in), 1/sqrt(in)).
    bound_b = 1.0 / float(np.sqrt(in_features))
    b = jax.random.uniform(kb, (out_features,), jnp.float32,
                           minval=-bound_b, maxval=bound_b)
    return w, b


if __name__ == "__main__":
    in_features = 32
    out_features = 32
    lead_shape = (2, 8)          # arbitrary leading dims, flattened to M=16
    omega_0 = 30.0
    is_first = True

    key = jax.random.PRNGKey(0)
    kx, kp = jax.random.split(key)

    x = jax.random.uniform(kx, lead_shape + (in_features,), jnp.float32,
                           minval=-1.0, maxval=1.0)
    w, b = init_sine_layer_params(kp, in_features, out_features,
                                  is_first=is_first, omega_0=omega_0)

    y = sine_layer(x, w, b, omega_0=omega_0)
    y = jax.block_until_ready(y)

    # Pure-JAX reference check.
    y_ref = jnp.sin(omega_0 * (x @ w.T + b))
    np.testing.assert_allclose(np.asarray(y), np.asarray(y_ref),
                               rtol=2e-5, atol=2e-5)

    print("KERNEL_OK")
</pallas_src>

<mosaic_0001>
module attributes {stable_mosaic.version = 11 : i64} {
  func.func @_sine_layer_kernel(%arg0: i32, %arg1: i32, %arg2: memref<16x32xf32, #tpu.memory_space<vmem>>, %arg3: memref<32x128xf32, #tpu.memory_space<vmem>>, %arg4: memref<1x128xf32, #tpu.memory_space<vmem>>, %arg5: memref<16x128xf32, #tpu.memory_space<vmem>>) attributes {dimension_semantics = [#tpu.dimension_semantics<parallel>, #tpu.dimension_semantics<parallel>], iteration_bounds = array<i64: 1, 1>, scalar_prefetch = 0 : i64, scratch_operands = 0 : i64, tpu.core_type = #tpu.core_type<tc>, window_params = [{transform_indices = @transform_0, window_bounds = array<i64: 16, 32>}, {transform_indices = @transform_1, window_bounds = array<i64: 32, 128>}, {transform_indices = @transform_2, window_bounds = array<i64: 1, 128>}, {transform_indices = @transform_3, window_bounds = array<i64: 16, 128>}]} {
    %c0 = arith.constant 0 : index
    %c0_0 = arith.constant 0 : index
    %0 = vector.load %arg2[%c0, %c0_0] : memref<16x32xf32, #tpu.memory_space<vmem>>, vector<16x32xf32>
    %c0_1 = arith.constant 0 : index
    %c0_2 = arith.constant 0 : index
    %1 = vector.load %arg3[%c0_1, %c0_2] : memref<32x128xf32, #tpu.memory_space<vmem>>, vector<32x128xf32>
    %cst = arith.constant dense<0.000000e+00> : vector<16x128xf32>
    %2 = tpu.matmul %0, %1, %cst {dimension_numbers = #tpu.dot_dimension_numbers<[1], [0], [0], [1], [0, 0, 1, 1], [], []>} : vector<16x32xf32>, vector<32x128xf32>, vector<16x128xf32> -> vector<16x128xf32>
    %cst_3 = arith.constant 3.000000e+01 : f32
    %3 = vector.broadcast %cst_3 : f32 to vector<16x128xf32>
    %4 = arith.mulf %3, %2 : vector<16x128xf32>
    %c0_4 = arith.constant 0 : index
    %c0_5 = arith.constant 0 : index
    %5 = vector.load %arg4[%c0_4, %c0_5] : memref<1x128xf32, #tpu.memory_space<vmem>>, vector<1x128xf32>
    %6 = vector.broadcast %5 : vector<1x128xf32> to vector<16x128xf32>
    %7 = arith.addf %4, %6 : vector<16x128xf32>
    %8 = math.sin %7 : vector<16x128xf32>
    %c0_6 = arith.constant 0 : index
    %c0_7 = arith.constant 0 : index
    %9 = vector.load %arg5[%c0_6, %c0_7] : memref<16x128xf32, #tpu.memory_space<vmem>>, vector<16x128xf32>
    tpu.vector_store %arg5[%c0_6, %c0_7], %8 {strides = array<i32>} : memref<16x128xf32, #tpu.memory_space<vmem>>, vector<16x128xf32>,
    return
  }
  func.func @transform_0(%arg0: i32, %arg1: i32) -> (i32, i32) {
    %c0_i32 = arith.constant 0 : i32
    %c0_i32_0 = arith.constant 0 : i32
    return %arg0, %c0_i32 : i32, i32
  }
  func.func @transform_1(%arg0: i32, %arg1: i32) -> (i32, i32) {
    %c0_i32 = arith.constant 0 : i32
    %c0_i32_0 = arith.constant 0 : i32
    return %c0_i32, %arg1 : i32, i32
  }
  func.func @transform_2(%arg0: i32, %arg1: i32) -> (i32, i32) {
    %c0_i32 = arith.constant 0 : i32
    %c0_i32_0 = arith.constant 0 : i32
    return %c0_i32, %arg1 : i32, i32
  }
  func.func @transform_3(%arg0: i32, %arg1: i32) -> (i32, i32) {
    %c0_i32 = arith.constant 0 : i32
    return %arg0, %arg1 : i32, i32
  }
}

</mosaic_0001>

<llo_original>
// kernel: tpu_custom_call.1
$region0: #{tpu_custom_call.1}
  #allocation0 [shape = 'u32[]', space=smem, size = 0x4, offset = 0x4, fixed_abs, tag = 'smem constant byte address 0x4 - core index']
  #allocation1 [shape = 'u32[144,128]{1,0:T(1,128)}', space=vmem, size = 0x12000, scoped, tag = 'internal scratch']
  %s0 = inlined_call_operand.hbm [shape: f32[16,32], index: 0, kind: input, shape index: {}]
  %s1 = inlined_call_operand.hbm [shape: f32[32,128], index: 1, kind: input, shape index: {}]
  %s2 = inlined_call_operand.vmem [shape: f32[1,128], index: 2, kind: input, shape index: {}]
  %s3 = inlined_call_operand.hbm [shape: f32[16,128], index: 3, kind: output, shape index: {}]
  %s4 = sld [smem:[#allocation0]]
  $region30: #{tpu_custom_call.1} parent=0
    _
  %s6 = ssub.s32 1, %s4
  %s7 = scalar_select 0, %s6, %s4
  $region1: #{tpu_custom_call.1} parent=0
    #allocation2 [shape = 'u8[8192]{0}', space=vmem, size = 0x2000, scoped, tag = 'input window, operand 0, single buffered']
    #allocation3 [shape = 's32[1]{0}', space=sflag, size = 0x4, scoped, tag = 'scoped memory for tpu_custom_call.1']
    #allocation4 [shape = 's32[1]{0}', space=sflag, size = 0x4, scoped, tag = 'scoped memory for tpu_custom_call.1']
    #allocation5 [shape = 'u8[16384]{0}', space=vmem, size = 0x4000, scoped, tag = 'input window, operand 1, single buffered']
    #allocation6 [shape = 's32[1]{0}', space=sflag, size = 0x4, scoped, tag = 'scoped memory for tpu_custom_call.1']
    #allocation7 [shape = 'u8[8192]{0}', space=vmem, size = 0x2000, scoped, tag = 'output window, operand 0, single buffered']
    %8 = vsyncpa [#allocation3], 0
    %9 = vsyncpa [#allocation6], 0
    %10 = vsyncpa [#allocation4], 0
    // Predicated region
    $region2: #{tpu_custom_call.1} parent=1 // pred_check
      _
    $region3: #{tpu_custom_call.1} parent=1 // pred_check_branch
      %12 = sbr.rel (0) target = $region5
    $region4: #{tpu_custom_call.1} parent=1 // pred_region
      %s14 = ssub.s32 256, 256
      %15 = vsyncadd [#allocation3], %s14
      %s16 = sshll.u32 [#allocation2], 4
      %s17 = int_to_ptr.vmem [resolvable:$true] %s16
      %22 = dma.hbm_to_vmem [thread:$0]  %s0, 256, %s17, [#allocation3], 128, 128, 8
    $region5: #{tpu_custom_call.1} parent=1 // pred_fallthru
      _
    // Predicated region
    $region6: #{tpu_custom_call.1} parent=1 // pred_check
      _
    $region7: #{tpu_custom_call.1} parent=1 // pred_check_branch
      %24 = sbr.rel (0) target = $region9
    $region8: #{tpu_custom_call.1} parent=1 // pred_region
      %s26 = ssub.s32 512, 512
      %27 = vsyncadd [#allocation6], %s26
      %s28 = sshll.u32 [#allocation5], 4
      %s29 = int_to_ptr.vmem [resolvable:$true] %s28
      %34 = dma.hbm_to_vmem [thread:$0]  %s1, 512, %s29, [#allocation6], 128, 128, 8
    $region9: #{tpu_custom_call.1} parent=1 // pred_fallthru
      _
    // Predicated region
    $region10: #{tpu_custom_call.1} parent=1 // pred_check
      _
    $region11: #{tpu_custom_call.1} parent=1 // pred_check_branch
      %36 = sbr.rel (0) target = $region13
    $region12: #{tpu_custom_call.1} parent=1 // pred_region
      _
    $region13: #{tpu_custom_call.1} parent=1 // pred_fallthru
      _
    // Predicated region
    $region14: #{tpu_custom_call.1} parent=1 // pred_check
      _
    $region15: #{tpu_custom_call.1} parent=1 // pred_check_branch
      %38 = sbr.rel (0) target = $region17
    $region16: #{tpu_custom_call.1} parent=1 // pred_region
      %39 = dma.done [#allocation3], 256
    $region17: #{tpu_custom_call.1} parent=1 // pred_fallthru
      _
    // Predicated region
    $region18: #{tpu_custom_call.1} parent=1 // pred_check
      _
    $region19: #{tpu_custom_call.1} parent=1 // pred_check_branch
      %41 = sbr.rel (0) target = $region21
    $region20: #{tpu_custom_call.1} parent=1 // pred_region
      %42 = dma.done [#allocation6], 512
    $region21: #{tpu_custom_call.1} parent=1 // pred_fallthru
      _
    %v43 = vld [vmem:[#allocation2] sm:$0xff]
    %v44 = vld [vmem:[#allocation2 + $0x8] sm:$0xff]
    %v45 = vld [vmem:[#allocation5] sm:$0xff]
    %v46 = vld [vmem:[#allocation5 + $0x8] sm:$0xff]
    %v47 = vld [vmem:[#allocation5 + $0x10] sm:$0xff]
    %v48 = vld [vmem:[#allocation5 + $0x18] sm:$0xff]
    %vm49 = vcmask 261120
    %v51 = vsel %vm49, %v43, 0
    %v54 = vsel %vm49, %v44, 0
    %56 = vmatprep.subr.mxu0 0.0
    %57 = vmatpush1.msra.mxu0 0.0
    %58 = vmatprep.subr.mxu0 0.0
    %59 = vmatpush1.msra.mxu0 0.0
    %60 = vmatprep.subr.mxu0 0.0
    %61 = vmatpush1.msra.mxu0 0.0
    %62 = vmatprep.subr.mxu0 0.0
    %63 = vmatpush1.msra.mxu0 0.0
    %64 = vmatprep.subr.mxu0 0.0
    %65 = vmatpush1.msra.mxu0 0.0
    %66 = vmatprep.subr.mxu0 0.0
    %67 = vmatpush1.msra.mxu0 0.0
    %68 = vmatprep.subr.mxu0 0.0
    %69 = vmatpush1.msra.mxu0 0.0
    %70 = vmatprep.subr.mxu0 0.0
    %71 = vmatpush1.msra.mxu0 0.0
    %72 = vmatprep.subr.mxu0 0.0
    %73 = vmatpush1.msra.mxu0 0.0
    %74 = vmatprep.subr.mxu0 0.0
    %75 = vmatpush1.msra.mxu0 0.0
    %76 = vmatprep.subr.mxu0 0.0
    %77 = vmatpush1.msra.mxu0 0.0
    %78 = vmatprep.subr.mxu0 0.0
    %79 = vmatpush1.msra.mxu0 0.0
    %80 = vmatprep.subr.mxu0 0.0
    %81 = vmatpush1.msra.mxu0 %v48
    %82 = vmatprep.subr.mxu0 0.0
    %83 = vmatpush1.msra.mxu0 %v47
    %84 = vmatprep.subr.mxu0 0.0
    %85 = vmatpush1.msra.mxu0 %v46
    %86 = vmatprep.subr.mxu0 0.0
    %87 = vmatpush1.msra.mxu0 %v45
    %88 = vmatprep.subr.mxu0 0.0
    %89 = vmatpush2.msra.mxu0 0.0
    %90 = vmatprep.subr.mxu0 0.0
    %91 = vmatpush2.msra.mxu0 0.0
    %92 = vmatprep.subr.mxu0 0.0
    %93 = vmatpush2.msra.mxu0 0.0
    %94 = vmatprep.subr.mxu0 0.0
    %95 = vmatpush2.msra.mxu0 0.0
    %96 = vmatprep.subr.mxu0 0.0
    %97 = vmatpush2.msra.mxu0 0.0
    %98 = vmatprep.subr.mxu0 0.0
    %99 = vmatpush2.msra.mxu0 0.0
    %100 = vmatprep.subr.mxu0 0.0
    %101 = vmatpush2.msra.mxu0 0.0
    %102 = vmatprep.subr.mxu0 0.0
    %103 = vmatpush2.msra.mxu0 0.0
    %104 = vmatprep.subr.mxu0 0.0
    %105 = vmatpush2.msra.mxu0 0.0
    %106 = vmatprep.subr.mxu0 0.0
    %107 = vmatpush2.msra.mxu0 0.0
    %108 = vmatprep.subr.mxu0 0.0
    %109 = vmatpush2.msra.mxu0 0.0
    %110 = vmatprep.subr.mxu0 0.0
    %111 = vmatpush2.msra.mxu0 0.0
    %112 = vmatprep.subr.mxu0 0.0
    %113 = vmatpush2.msra.mxu0 0.0
    %114 = vmatprep.subr.mxu0 0.0
    %115 = vmatpush2.msra.mxu0 0.0
    %116 = vmatprep.subr.mxu0 0.0
    %117 = vmatpush2.msra.mxu0 0.0
    %118 = vmatprep.subr.mxu0 0.0
    %119 = vmatpush2.msra.mxu0 0.0
    %120 = vmatprep.mubr.f32.mxu0 0.0
    %121 = vmatmul.mubr.f32.gmra.mxu0 %v51
    %v122 = vpop.f32.mrf.mxu0
    %v123 = vadd.f32 0.0, %v122
    %v124 = vpop.f32.mrf.mxu0
    %125 = vmatprep.mubr.f32.mxu0 0.0
    %126 = vmatmul.mubr.f32.gmra.mxu0 %v54
    %v127 = vpop.f32.mrf.mxu0
    %v128 = vadd.f32 0.0, %v127
    %v129 = vpop.f32.mrf.mxu0
    %130 = vdwg.mxu0
    %v131 = vmul.f32 %v123, 30.0
    %v132 = vmul.f32 %v128, 30.0
    %v133 = vld [vmem:[%s2] sm:$0x1]
    %v135 = vlaneseq
    %v136 = vshrl.u32 %v135, 7
    %v137 = vsub.s32 0, %v136
    %v138 = vrot.slane %v133, %v137
    %v140 = vadd.f32 %v131, %v138
    %v141 = vadd.f32 %v132, %v138
    %v142 = vand.u32 2147483647, %v140
    %vm143 = vcmp.le.f32.partialorder %v142, 0.7853982
    %vm144 = vcmp.lt.s32.totalorder %v140, 0
    %v145 = vand.u32 %v140, 2139095040
    %v146 = vshrl.u32 %v145, 23
    %v147 = vsub.s32 %v146, 127
    %v148 = vand.u32 2147483647, %v140
    %v149 = vand.u32 %v148, 8388607
    %v150 = vor.u32 %v149, 8388608
    %v151 = vsub.s32 0, %v150
    %v152 = vadd.s32 %v147, 1
    %vm153 = vcmp.gt.s32.totalorder %v152, 0
    %v154 = vsel %vm153, %v152, 0
    %v155 = vshrl.u32 %v154, 5
    %v156 = vand.u32 %v154, 31
    %v157 = vsub.s32 32, %v156
    %v158 = vshrl.u32 683565275, %v157
    %v159 = vshll.u32 683565275, %v156
    %v160 = vshrl.u32 2475754826, %v157
    %v161 = vor.u32 %v159, %v160
    %v162 = vshll.u32 2475754826, %v156
    %v163 = vshrl.u32 2131351028, %v157
    %v164 = vor.u32 %v162, %v163
    %v165 = vshll.u32 2131351028, %v156
    %v166 = vshrl.u32 2102212464, %v157
    %v167 = vor.u32 %v165, %v166
    %v168 = vshll.u32 2102212464, %v156
    %v169 = vshrl.u32 920167782, %v157
    %v170 = vor.u32 %v168, %v169
    %v171 = vshll.u32 920167782, %v156
    %v172 = vshrl.u32 1326507024, %v157
    %v173 = vor.u32 %v171, %v172
    %vm174 = vcmp.lt.s32.totalorder %v155, 1
    %vm175 = vcmp.lt.s32.totalorder %v155, 2
    %vm176 = vcmp.lt.s32.totalorder %v155, 3
    %vm177 = vcmp.lt.s32.totalorder %v155, 4
    %v178 = vsel %vm174, %v158, %v161
    %v179 = vsel %vm177, %v167, 2102212464
    %v180 = vsel %vm176, %v164, %v179
    %v181 = vsel %vm175, %v178, %v180
    %v182 = vsel %vm174, %v161, %v164
    %v183 = vsel %vm177, %v170, 920167782
    %v184 = vsel %vm176, %v167, %v183
    %v185 = vsel %vm175, %v182, %v184
    %v186 = vsel %vm174, %v164, %v167
    %v187 = vsel %vm177, %v173, 1326507024
    %v188 = vsel %vm176, %v170, %v187
    %v189 = vsel %vm175, %v186, %v188
    %v190 = vshll.u32 %v150, 8
    %v191 = vmul.u32.u64.compose %v190, %v189
    %v192 = vextract.low.u32 %v191
    %v193 = vextract.high.u32 %v191
    %v194 = vmul.u32.u64.compose %v190, %v185
    %v195 = vextract.low.u32 %v194
    %v196 = vextract.high.u32 %v194
    %v197 = vmul.u32 %v190, %v181
    %v198 = vadd.s32 %v193, %v195
    %vm199 = vc.u32 %v193, %v195
    %v200 = vadd.s32 %v196, 1
    %v201 = vsel %vm199, %v200, %v196
    %v202 = vadd.s32 %v197, %v201
    %v203 = vadd.s32 %v202, 536870912
    %v204 = vshrl.u32 %v203, 30
    %v205 = vshll.u32 %v204, 30
    %v206 = vsub.s32 %v202, %v205
    %vm207 = vcmp.lt.s32.totalorder %v206, 0
    %v208 = vsub.s32 0, %v206
    %v209 = vsel %vm207, %v208, %v206
    %v210 = vclz %v209
    %v211 = vsub.s32 %v210, 2
    %vm212 = vcmp.gt.s32.totalorder 0, %v211
    %v213 = vsel %vm212, 0, %v211
    %v214 = vsub.s32 32, %v213
    %v215 = vshll.u32 %v206, %v213
    %v216 = vshrl.u32 %v198, %v214
    %v217 = vor.u32 %v215, %v216
    %v218 = vsub.s32 4294967266, %v213
    %v219 = vadd.s32 %v218, 127
    %v220 = vshll.u32 %v219, 23
    %v221 = vor.u32 4788187, %v220
    %v222 = vand.u32 2147483647, %v221
    %v224 = vcvt.s32.f32 %v217
    %v225 = vmul.f32 %v224, %v222
    %v226 = vxor.u32 %v225, 2147483648
    %v227 = vsel %vm144, %v226, %v225
    %v228 = vsub.s32 4, %v204
    %v229 = vsel %vm144, %v228, %v204
    %v230 = vsel %vm143, %v140, %v227
    %v231 = vsel %vm143, 0, %v229
    %v232 = vcosq.f32.pop %v230
    %v233 = vsinq.f32.pop %v230
    %vm234 = vweird.f32 %v140
    %v235 = vadd.s32 %v231, 3
    %v236 = vand.u32 %v235, 3
    %vm237 = vcmp.lt.s32.totalorder %v236, 2
    %vm238 = vcmp.eq.s32.totalorder %v236, 0
    %v239 = vxor.u32 %v233, 2147483648
    %v240 = vsel %vm238, %v232, %v239
    %vm241 = vcmp.eq.s32.totalorder %v236, 2
    %v242 = vxor.u32 %v232, 2147483648
    %v243 = vsel %vm241, %v242, %v233
    %v244 = vsel %vm237, %v240, %v243
    %v245 = vsel %vm234, nan, %v244
    %v246 = vand.u32 2147483647, %v141
    %vm247 = vcmp.le.f32.partialorder %v246, 0.7853982
    %vm248 = vcmp.lt.s32.totalorder %v141, 0
    %v249 = vand.u32 %v141, 2139095040
    %v250 = vshrl.u32 %v249, 23
    %v251 = vsub.s32 %v250, 127
    %v252 = vand.u32 2147483647, %v141
    %v253 = vand.u32 %v252, 8388607
    %v254 = vor.u32 %v253, 8388608
    %v255 = vsub.s32 0, %v254
    %v256 = vadd.s32 %v251, 1
    %vm257 = vcmp.gt.s32.totalorder %v256, 0
    %v258 = vsel %vm257, %v256, 0
    %v259 = vshrl.u32 %v258, 5
    %v260 = vand.u32 %v258, 31
    %v261 = vsub.s32 32, %v260
    %v262 = vshrl.u32 683565275, %v261
    %v263 = vshll.u32 683565275, %v260
    %v264 = vshrl.u32 2475754826, %v261
    %v265 = vor.u32 %v263, %v264
    %v266 = vshll.u32 2475754826, %v260
    %v267 = vshrl.u32 2131351028, %v261
    %v268 = vor.u32 %v266, %v267
    %v269 = vshll.u32 2131351028, %v260
    %v270 = vshrl.u32 2102212464, %v261
    %v271 = vor.u32 %v269, %v270
    %v272 = vshll.u32 2102212464, %v260
    %v273 = vshrl.u32 920167782, %v261
    %v274 = vor.u32 %v272, %v273
    %v275 = vshll.u32 920167782, %v260
    %v276 = vshrl.u32 1326507024, %v261
    %v277 = vor.u32 %v275, %v276
    %vm278 = vcmp.lt.s32.totalorder %v259, 1
    %vm279 = vcmp.lt.s32.totalorder %v259, 2
    %vm280 = vcmp.lt.s32.totalorder %v259, 3
    %vm281 = vcmp.lt.s32.totalorder %v259, 4
    %v282 = vsel %vm278, %v262, %v265
    %v283 = vsel %vm281, %v271, 2102212464
    %v284 = vsel %vm280, %v268, %v283
    %v285 = vsel %vm279, %v282, %v284
    %v286 = vsel %vm278, %v265, %v268
    %v287 = vsel %vm281, %v274, 920167782
    %v288 = vsel %vm280, %v271, %v287
    %v289 = vsel %vm279, %v286, %v288
    %v290 = vsel %vm278, %v268, %v271
    %v291 = vsel %vm281, %v277, 1326507024
    %v292 = vsel %vm280, %v274, %v291
    %v293 = vsel %vm279, %v290, %v292
    %v294 = vshll.u32 %v254, 8
    %v295 = vmul.u32.u64.compose %v294, %v293
    %v296 = vextract.low.u32 %v295
    %v297 = vextract.high.u32 %v295
    %v298 = vmul.u32.u64.compose %v294, %v289
    %v299 = vextract.low.u32 %v298
    %v300 = vextract.high.u32 %v298
    %v301 = vmul.u32 %v294, %v285
    %v302 = vadd.s32 %v297, %v299
    %vm303 = vc.u32 %v297, %v299
    %v304 = vadd.s32 %v300, 1
    %v305 = vsel %vm303, %v304, %v300
    %v306 = vadd.s32 %v301, %v305
    %v307 = vadd.s32 %v306, 536870912
    %v308 = vshrl.u32 %v307, 30
    %v309 = vshll.u32 %v308, 30
    %v310 = vsub.s32 %v306, %v309
    %vm311 = vcmp.lt.s32.totalorder %v310, 0
    %v312 = vsub.s32 0, %v310
    %v313 = vsel %vm311, %v312, %v310
    %v314 = vclz %v313
    %v315 = vsub.s32 %v314, 2
    %vm316 = vcmp.gt.s32.totalorder 0, %v315
    %v317 = vsel %vm316, 0, %v315
    %v318 = vsub.s32 32, %v317
    %v319 = vshll.u32 %v310, %v317
    %v320 = vshrl.u32 %v302, %v318
    %v321 = vor.u32 %v319, %v320
    %v322 = vsub.s32 4294967266, %v317
    %v323 = vadd.s32 %v322, 127
    %v324 = vshll.u32 %v323, 23
    %v325 = vor.u32 4788187, %v324
    %v326 = vand.u32 2147483647, %v325
    %v328 = vcvt.s32.f32 %v321
    %v329 = vmul.f32 %v328, %v326
    %v330 = vxor.u32 %v329, 2147483648
    %v331 = vsel %vm248, %v330, %v329
    %v332 = vsub.s32 4, %v308
    %v333 = vsel %vm248, %v332, %v308
    %v334 = vsel %vm247, %v141, %v331
    %v335 = vsel %vm247, 0, %v333
    %v336 = vcosq.f32.pop %v334
    %v337 = vsinq.f32.pop %v334
    %vm338 = vweird.f32 %v141
    %v339 = vadd.s32 %v335, 3
    %v340 = vand.u32 %v339, 3
    %vm341 = vcmp.lt.s32.totalorder %v340, 2
    %vm342 = vcmp.eq.s32.totalorder %v340, 0
    %v343 = vxor.u32 %v337, 2147483648
    %v344 = vsel %vm342, %v336, %v343
    %vm345 = vcmp.eq.s32.totalorder %v340, 2
    %v346 = vxor.u32 %v336, 2147483648
    %v347 = vsel %vm345, %v346, %v337
    %v348 = vsel %vm341, %v344, %v347
    %v349 = vsel %vm338, nan, %v348
    %350 = vst [vmem:[#allocation7] sm:$0xff] %v245
    %351 = vst [vmem:[#allocation7 + $0x8] sm:$0xff] %v349
    // Predicated region
    $region22: #{tpu_custom_call.1} parent=1 // pred_check
      _
    $region23: #{tpu_custom_call.1} parent=1 // pred_check_branch
      %353 = sbr.rel (0) target = $region25
    $region24: #{tpu_custom_call.1} parent=1 // pred_region
      %s355 = ssub.s32 256, 256
      %356 = vsyncadd [#allocation4], %s355
      %s357 = sshll.u32 [#allocation7], 4
      %s358 = int_to_ptr.vmem [resolvable:$true] %s357
      %363 = dma.vmem_to_hbm [thread:$0]  %s358, 256, %s3, [#allocation4], 128, 128, 8
    $region25: #{tpu_custom_call.1} parent=1 // pred_fallthru
      _
    // Predicated region
    $region26: #{tpu_custom_call.1} parent=1 // pred_check
      _
    $region27: #{tpu_custom_call.1} parent=1 // pred_check_branch
      %365 = sbr.rel (0) target = $region29
    $region28: #{tpu_custom_call.1} parent=1 // pred_region
      %366 = dma.done [#allocation4], 256
    $region29: #{tpu_custom_call.1} parent=1 // pred_fallthru
      _
    %367 = vsyncpa [#allocation3], 1
    %368 = vsyncpa [#allocation6], 1
    %369 = vsyncpa [#allocation4], 1

</llo_original>
